<compile_context>
chip_gen: v7x
topology: tpu7x:2x2x1
jax: 0.10.0
libtpu: 0.0.40
codegen_flags: <defaults>
</compile_context>

<pallas_src>
import functools

import jax
import jax.numpy as jnp
from jax.experimental import pallas as pl
from jax.experimental.pallas import tpu as pltpu

_LANE = 128
_SUBLANE = 8
_MIN_PALLAS_ROWS = 64        # below this, pallas_call launch overhead dominates


def _round_up(x, m):
    return ((x + m - 1) // m) * m


def _cdiv(a, b):
    return -(-a // b)


def _vmem_capacity_bytes():
    """Per-TensorCore VMEM; conservative 64 MiB (v7x-class) if undetectable."""
    try:
        return int(pltpu.get_tpu_info().vmem_capacity_bytes)
    except Exception:
        return 64 * 1024 * 1024


def _tiling_params():
    vmem = _vmem_capacity_bytes()
    small = vmem <= 80 * 1024 * 1024               # v7x-class: 64 MiB / TC, 2 TCs
    return dict(
        budget=min(48 << 20, (vmem * 3) // 8),     # VMEM assumed usable for tiles
        limit=min(64 << 20, (vmem * 5) // 8),      # scoped vmem_limit_bytes request
        max_tile=512 if small else 1024,           # v5e/v6e: bigger tiles, ~86% roofline
        # v7x: keep >= 4 batch tiles so the "parallel" axis balances across the
        # two TensorCores and pipelining stays > 1 step deep per core.
        min_tiles=4 if small else 2,
    )


def _pick_tile_b(B, D, Y_pad, k, x_itemsize, w_itemsize, p):
    # Resident weight + bias.  Constant index_map => fetched once, but default
    # BlockSpec still allocates two buffers, so budget x2.
    w_bytes = 2 * (k * D * Y_pad * w_itemsize + Y_pad * 4)
    avail = max(p["budget"] - w_bytes, _SUBLANE * 4 * D)
    # Per output row: x1/x2 double-buffered + output double-buffered + in-kernel
    # f32 feature slab + its cast copy + f32 accumulator.
    per_row = (2 * 2 * D * x_itemsize + 2 * Y_pad * x_itemsize
               + k * D * 4 + k * D * w_itemsize + Y_pad * 4)
    tile = avail // per_row
    balanced = _round_up(_cdiv(B, p["min_tiles"]), _SUBLANE)
    tile = int(min(tile, p["max_tile"], balanced, _round_up(B, _SUBLANE)))
    return max(_SUBLANE, (tile // _SUBLANE) * _SUBLANE)


def _classifier_kernel(x1_ref, x2_ref, wt_ref, b_ref, o_ref, *, num_feats):
    # Feature math in f32: cheap VPU filler on all generations, avoids bf16
    # VALU converts on v5e and extra bf16 rounding; only the fused dot operand
    # is cast down to the weight dtype.
    x1 = x1_ref[...].astype(jnp.float32)
    x2 = x2_ref[...].astype(jnp.float32)
    if num_feats == 4:
        feats = (x1, x2, jnp.abs(x1 - x2), x1 * x2)
    else:
        feats = (x1, x2)

    # Dropout: default opt gives p = 0 (identity), so nothing to do here.
    # TODO(synk): training-mode dropout (p > 0) would need pltpu.prng_seed /
    # pltpu.prng_random_bits with a grid-invariant seed; not implemented.

    x = jnp.concatenate(feats, axis=1).astype(wt_ref.dtype)          # [tb, k*D]
    # Single fused K = k*D matmul (fills the MXU contraction depth on v5e/v6e,
    # removes 3 result-pop + VPU-add passes); f32 accumulation.  The [B, k*D]
    # concat only ever exists as a VMEM tile, never in HBM.
    acc = jnp.dot(x, wt_ref[...], preferred_element_type=jnp.float32)
    o_ref[...] = (acc + b_ref[...]).astype(o_ref.dtype)


def prepare_classifier_params(w, b, *, merge_opt=0, dtype=None):
    """One-time prep (hoist out of the inference loop).

    w: [Y, k*D] (PyTorch Linear layout), b: [Y]
    -> (wt [k*D, Y_pad], b2 [1, Y_pad]) with Y padded to a multiple of 128 so the
    kernel's output store is lane-dense (unmasked).  Pass dtype=jnp.bfloat16 to
    store the weight in bf16 (halves weight HBM traffic; f32 accumulation kept).
    """
    k = 4 if merge_opt == 1 else 2
    Y, kd = w.shape
    assert kd % k == 0, "weight in_features must be k * x_size"
    Y_pad = _round_up(max(Y, 1), _LANE)
    wt = jnp.asarray(w).T                                         # [k*D, Y]
    wt = jnp.pad(wt, ((0, 0), (0, Y_pad - Y)))                    # [k*D, Y_pad]
    if dtype is not None:
        wt = wt.astype(dtype)
    b2 = jnp.pad(jnp.asarray(b, jnp.float32).reshape(1, Y), ((0, 0), (0, Y_pad - Y)))
    return wt, b2


@functools.partial(jax.jit, static_argnames=("y_size", "tile_b"))
def classifier_forward_prepared(x1, x2, wt, b2, *, y_size, tile_b=None):
    """x1, x2: [B, D]; wt: [k*D, Y_pad]; b2: [1, Y_pad] -> scores [B, y_size]."""
    B, D = x1.shape
    KD, Y_pad = wt.shape
    assert x2.shape == (B, D)
    assert KD % D == 0 and Y_pad % _LANE == 0 and b2.shape == (1, Y_pad)
    k = KD // D
    assert k in (2, 4)
    assert y_size <= Y_pad
    out_dtype = x1.dtype

    # Tiny problems: pallas_call launch + per-step overhead dominates -> plain JAX.
    if B < _MIN_PALLAS_ROWS:
        x1f = x1.astype(jnp.float32)
        x2f = x2.astype(jnp.float32)
        if k == 4:
            x = jnp.concatenate([x1f, x2f, jnp.abs(x1f - x2f), x1f * x2f], axis=1)
        else:
            x = jnp.concatenate([x1f, x2f], axis=1)
        out = jnp.dot(x.astype(wt.dtype), wt, preferred_element_type=jnp.float32) + b2
        return out[:, :y_size].astype(out_dtype)

    x_itemsize = jnp.dtype(x1.dtype).itemsize
    w_itemsize = jnp.dtype(wt.dtype).itemsize
    params = _tiling_params()

    if tile_b is not None:                       # guard: keep (8,128) constraint
        tb = max(_SUBLANE, _round_up(int(tile_b), _SUBLANE))
        tb = min(tb, _round_up(B, _SUBLANE))
    else:
        tb = _pick_tile_b(B, D, Y_pad, k, x_itemsize, w_itemsize, params)

    num_tiles = _cdiv(B, tb)                     # ragged last block handled by Pallas
    kernel = functools.partial(_classifier_kernel, num_feats=k)

    flops = 2 * B * k * D * Y_pad
    bytes_accessed = (2 * B * D * x_itemsize
                      + k * D * Y_pad * w_itemsize
                      + B * Y_pad * jnp.dtype(out_dtype).itemsize
                      + Y_pad * 4)

    out = pl.pallas_call(
        kernel,
        out_shape=jax.ShapeDtypeStruct((B, Y_pad), out_dtype),
        grid=(num_tiles,),
        in_specs=[
            pl.BlockSpec((tb, D), lambda i: (i, 0)),          # x1 batch tile
            pl.BlockSpec((tb, D), lambda i: (i, 0)),          # x2 batch tile
            pl.BlockSpec((KD, Y_pad), lambda i: (0, 0)),      # weight, VMEM-resident
            pl.BlockSpec((1, Y_pad), lambda i: (0, 0)),       # bias, VMEM-resident
        ],
        out_specs=pl.BlockSpec((tb, Y_pad), lambda i: (i, 0)),
        compiler_params=pltpu.CompilerParams(
            dimension_semantics=("parallel",),    # v7x: shard batch tiles on 2 TCs
            vmem_limit_bytes=int(params["limit"]),
        ),
        cost_estimate=pl.CostEstimate(
            flops=flops, transcendentals=0, bytes_accessed=bytes_accessed),
    )(x1, x2, wt, b2)

    return out[:, :y_size]


def classifier_forward(x1, x2, w, b, *, merge_opt=0, tile_b=None, compute_dtype=None):
    """Convenience wrapper taking the raw PyTorch-layout Linear weight [Y, k*D].

    NOTE: this re-runs the weight transpose/pad every call.  For repeated
    inference, call prepare_classifier_params() once and use
    classifier_forward_prepared() (see __main__)."""
    wt, b2 = prepare_classifier_params(w, b, merge_opt=merge_opt, dtype=compute_dtype)
    if compute_dtype is not None:
        x1 = x1.astype(compute_dtype)
        x2 = x2.astype(compute_dtype)
    return classifier_forward_prepared(x1, x2, wt, b2,
                                       y_size=int(w.shape[0]), tile_b=tile_b)


def _reference(x1, x2, w, b, *, merge_opt):
    if merge_opt == 1:
        x = jnp.concatenate([x1, x2, jnp.abs(x1 - x2), x1 * x2], axis=1)
    else:
        x = jnp.concatenate([x1, x2], axis=1)
    return jnp.dot(x, w.T, precision=jax.lax.Precision.HIGHEST) + b


if __name__ == "__main__":
    B, D, Y = 333, 128, 10       # ragged batch (exercises partial blocks), x_size, y_size

    key = jax.random.PRNGKey(0)
    k1, k2, kw, kb = jax.random.split(key, 4)
    x1 = jax.random.normal(k1, (B, D), dtype=jnp.float32)
    x2 = jax.random.normal(k2, (B, D), dtype=jnp.float32)

    for merge_opt in (1, 0):
        kk = 4 if merge_opt == 1 else 2
        in_features = D * kk
        bound = 1.0 / (in_features ** 0.5)
        w = jax.random.uniform(kw, (Y, in_features), jnp.float32, -bound, bound)
        b = jax.random.uniform(kb, (Y,), jnp.float32, -bound, bound)
        ref = _reference(x1, x2, w, b, merge_opt=merge_opt)

        # Prepare weights ONCE (hoists the transpose/pad out of the inference loop).
        wt, b2 = prepare_classifier_params(w, b, merge_opt=merge_opt)

        # (a) auto-sized tiles
        out = jax.block_until_ready(
            classifier_forward_prepared(x1, x2, wt, b2, y_size=Y))
        assert out.shape == (B, Y)
        assert jnp.allclose(out, ref, atol=1e-3, rtol=1e-3), f"mismatch merge_opt={merge_opt}"

        # (b) explicit small tile -> multi-tile grid with a ragged last block
        out_t = jax.block_until_ready(
            classifier_forward_prepared(x1, x2, wt, b2, y_size=Y, tile_b=128))
        assert jnp.allclose(out_t, ref, atol=1e-3, rtol=1e-3), "mismatch tiled path"

    # (c) bf16 activations + bf16 weights (halves HBM traffic on v6e/v7x);
    #     feature math stays f32 inside the kernel, accumulation is f32.
    w = jax.random.uniform(kw, (Y, 4 * D), jnp.float32, -0.05, 0.05)
    b = jax.random.uniform(kb, (Y,), jnp.float32, -0.05, 0.05)
    ref = _reference(x1, x2, w, b, merge_opt=1)
    wt16, b2 = prepare_classifier_params(w, b, merge_opt=1, dtype=jnp.bfloat16)
    out16 = jax.block_until_ready(
        classifier_forward_prepared(x1.astype(jnp.bfloat16), x2.astype(jnp.bfloat16),
                                    wt16, b2, y_size=Y))
    assert out16.shape == (B, Y)
    assert jnp.allclose(out16.astype(jnp.float32), ref, atol=1e-1, rtol=5e-2), "bf16 mismatch"

    # (d) tiny batch -> plain-JAX fallback path (launch overhead would dominate)
    out_small = jax.block_until_ready(
        classifier_forward(x1[:16], x2[:16], w, b, merge_opt=1))
    assert jnp.allclose(out_small, ref[:16], atol=1e-3, rtol=1e-3), "small-batch mismatch"

    print("KERNEL_OK")
</pallas_src>

<mosaic_0001>
module attributes {stable_mosaic.version = 11 : i64} {
  func.func @_classifier_kernel(%arg0: i32, %arg1: memref<88x128xf32, #tpu.memory_space<vmem>>, %arg2: memref<88x128xf32, #tpu.memory_space<vmem>>, %arg3: memref<512x128xf32, #tpu.memory_space<vmem>>, %arg4: memref<1x128xf32, #tpu.memory_space<vmem>>, %arg5: memref<88x128xf32, #tpu.memory_space<vmem>>) attributes {dimension_semantics = [#tpu.dimension_semantics<parallel>], iteration_bounds = array<i64: 4>, scalar_prefetch = 0 : i64, scratch_operands = 0 : i64, tpu.core_type = #tpu.core_type<tc>, window_params = [{transform_indices = @transform_0, window_bounds = array<i64: 88, 128>}, {transform_indices = @transform_1, window_bounds = array<i64: 88, 128>}, {pipeline_mode = #tpu.pipeline_mode<synchronous>, transform_indices = @transform_2, window_bounds = array<i64: 512, 128>}, {pipeline_mode = #tpu.pipeline_mode<synchronous>, transform_indices = @transform_3, window_bounds = array<i64: 1, 128>}, {transform_indices = @transform_4, window_bounds = array<i64: 88, 128>}]} {
    %c0 = arith.constant 0 : index
    %c0_0 = arith.constant 0 : index
    %0 = vector.load %arg1[%c0, %c0_0] : memref<88x128xf32, #tpu.memory_space<vmem>>, vector<88x128xf32>
    %c0_1 = arith.constant 0 : index
    %c0_2 = arith.constant 0 : index
    %1 = vector.load %arg2[%c0_1, %c0_2] : memref<88x128xf32, #tpu.memory_space<vmem>>, vector<88x128xf32>
    %2 = arith.subf %0, %1 : vector<88x128xf32>
    %3 = math.absf %2 : vector<88x128xf32>
    %4 = arith.mulf %0, %1 : vector<88x128xf32>
    %5 = tpu.concatenate %0, %1, %3, %4 in 1 : vector<88x128xf32>, vector<88x128xf32>, vector<88x128xf32>, vector<88x128xf32> -> vector<88x512xf32>
    %c0_3 = arith.constant 0 : index
    %c0_4 = arith.constant 0 : index
    %6 = vector.load %arg3[%c0_3, %c0_4] : memref<512x128xf32, #tpu.memory_space<vmem>>, vector<512x128xf32>
    %cst = arith.constant dense<0.000000e+00> : vector<88x128xf32>
    %7 = tpu.matmul %5, %6, %cst {dimension_numbers = #tpu.dot_dimension_numbers<[1], [0], [0], [1], [0, 0, 1, 1], [], []>} : vector<88x512xf32>, vector<512x128xf32>, vector<88x128xf32> -> vector<88x128xf32>
    %c0_5 = arith.constant 0 : index
    %c0_6 = arith.constant 0 : index
    %8 = vector.load %arg4[%c0_5, %c0_6] : memref<1x128xf32, #tpu.memory_space<vmem>>, vector<1x128xf32>
    %9 = vector.broadcast %8 : vector<1x128xf32> to vector<88x128xf32>
    %10 = arith.addf %7, %9 : vector<88x128xf32>
    %c0_7 = arith.constant 0 : index
    %c0_8 = arith.constant 0 : index
    %11 = vector.load %arg5[%c0_7, %c0_8] : memref<88x128xf32, #tpu.memory_space<vmem>>, vector<88x128xf32>
    tpu.vector_store %arg5[%c0_7, %c0_8], %10 {strides = array<i32>} : memref<88x128xf32, #tpu.memory_space<vmem>>, vector<88x128xf32>,
    return
  }
  func.func @transform_0(%arg0: i32) -> (i32, i32) {
    %c0_i32 = arith.constant 0 : i32
    %c0_i32_0 = arith.constant 0 : i32
    return %arg0, %c0_i32 : i32, i32
  }
  func.func @transform_1(%arg0: i32) -> (i32, i32) {
    %c0_i32 = arith.constant 0 : i32
    %c0_i32_0 = arith.constant 0 : i32
    return %arg0, %c0_i32 : i32, i32
  }
  func.func @transform_2(%arg0: i32) -> (i32, i32) {
    %c0_i32 = arith.constant 0 : i32
    %c0_i32_0 = arith.constant 0 : i32
    %c0_i32_1 = arith.constant 0 : i32
    return %c0_i32, %c0_i32_0 : i32, i32
  }
  func.func @transform_3(%arg0: i32) -> (i32, i32) {
    %c0_i32 = arith.constant 0 : i32
    %c0_i32_0 = arith.constant 0 : i32
    %c0_i32_1 = arith.constant 0 : i32
    return %c0_i32, %c0_i32_0 : i32, i32
  }
  func.func @transform_4(%arg0: i32) -> (i32, i32) {
    %c0_i32 = arith.constant 0 : i32
    %c0_i32_0 = arith.constant 0 : i32
    return %arg0, %c0_i32 : i32, i32
  }
}

</mosaic_0001>

<llo_original>
// kernel: classifier_forward_prepared.1
$region0: #{classifier_forward_prepared.1}
  #allocation0 [shape = 'u32[]', space=smem, size = 0x4, offset = 0x4, fixed_abs, tag = 'smem constant byte address 0x4 - core index']
  #allocation1 [shape = 'u32[144,128]{1,0:T(1,128)}', space=vmem, size = 0x12000, scoped, tag = 'internal scratch']
  %s0 = inlined_call_operand.hbm [shape: f32[333,128], index: 0, kind: input, shape index: {}]
  %s1 = inlined_call_operand.hbm [shape: f32[333,128], index: 1, kind: input, shape index: {}]
  %s2 = inlined_call_operand.hbm [shape: f32[512,128], index: 2, kind: input, shape index: {}]
  %s3 = inlined_call_operand.vmem [shape: f32[1,128], index: 3, kind: input, shape index: {}]
  %s4 = inlined_call_operand.vmem [shape: f32[333,128], index: 4, kind: output, shape index: {}]
  %s5 = sld [smem:[#allocation0]]
  $region109: #{classifier_forward_prepared.1} parent=0
    _
  %s7 = ssub.s32 1, %s5
  %s8 = scalar_select 0, %s7, %s5
  $region1: #{classifier_forward_prepared.1} parent=0
    #allocation2 [shape = 'u8[90112]{0}', space=vmem, size = 0x16000, scoped, tag = 'input window, operand 0']
    #allocation3 [shape = 's32[2]{0}', space=sflag, size = 0x8, scoped, tag = 'scoped memory for classifier_forward_prepared.1']
    #allocation4 [shape = 'u8[90112]{0}', space=vmem, size = 0x16000, scoped, tag = 'input window, operand 1']
    #allocation5 [shape = 's32[2]{0}', space=sflag, size = 0x8, scoped, tag = 'scoped memory for classifier_forward_prepared.1']
    #allocation6 [shape = 'u8[262144]{0}', space=vmem, size = 0x40000, scoped, tag = 'input window, operand 2, single buffered']
    #allocation7 [shape = 'u8[90112]{0}', space=vmem, size = 0x16000, scoped, tag = 'output window, operand 0']
    %9 = vsyncpa [#allocation3], 0
    %s10 = scalar_lea.sflag [#allocation3], 1
    %11 = vsyncpa %s10, 0
    %12 = vsyncpa [#allocation5], 0
    %s13 = scalar_lea.sflag [#allocation5], 1
    %14 = vsyncpa %s13, 0
    loop: start=0, step=1, limit=6
    $region2: #{classifier_forward_prepared.1} parent=1 // loop_pre_header
      _
    $region3: #{classifier_forward_prepared.1} parent=1 // loop_header
      %s16 = sphi 0, %s20
      %p17 = scmp.ge.s32.totalorder %s16, 6
      %s26 = sphi 0, %s28
      %s29 = sphi 0, %s26
      %s30 = sphi 0, %s29
      %s46 = sphi 0, %s30
      %s52 = sphi 0, %s54
      %s55 = sphi 0, %s52
      %s56 = sphi 0, %s55
      %s72 = sphi 0, %s56
      %s76 = sphi 0, %s76
      %s78 = sphi 0, %s76
      %s79 = sphi 0, %s78
      %s93 = sphi 0, %s79
      %s97 = sphi 0, %s97
      %s99 = sphi 0, %s97
      %s100 = sphi 0, %s99
      %s114 = sphi 0, %s100
      %s120 = sphi 0, %s122
      %s123 = sphi 0, %s120
      %s124 = sphi 0, %s123
      %s140 = sphi 0, %s124
    $region4: #{classifier_forward_prepared.1} parent=1 // loop_header_branch
      %19 = sbr.rel (%p17) target = $region8
    $region5: #{classifier_forward_prepared.1} parent=1 // loop_body
      %s21 = ssub.s32 %s16, 1
      %s22 = ssub.s32 %s16, 2
      %s23 = sadd.s32 %s16, 1
      %s24 = ssub.s32 %s16, %s23
      %p25 = scmp.eq.s32.totalorder %s24, 0
      %s27 = sadd.s32 %s26, 1
      %s28 = scalar_select %p25, %s26, %s27
      %p31 = pneg %p25
      %p32 = scmp.eq.s32.totalorder %s16, 3
      %p33 = por %p31, %p32
      %p34 = scmp.ne.s32.totalorder %s26, %s29
      %p35 = scmp.eq.s32.totalorder %s16, 0
      %p36 = por %p34, %p35
      %p37 = scmp.ne.s32.totalorder %s26, %s29
      %p38 = scmp.eq.s32.totalorder %s21, 3
      %p39 = por %p37, %p38
      %p40 = scmp.ne.s32.totalorder %s29, %s30
      %p41 = scmp.eq.s32.totalorder %s21, 0
      %p42 = por %p40, %p41
      %p43 = scmp.ne.s32.totalorder %s29, %s30
      %p44 = scmp.eq.s32.totalorder %s22, 3
      %p45 = por %p43, %p44
      %p47 = scmp.ne.s32.totalorder %s30, %s46
      %p48 = scmp.eq.s32.totalorder %s22, 0
      %p49 = por %p47, %p48
      %s50 = ssub.s32 %s16, %s23
      %p51 = scmp.eq.s32.totalorder %s50, 0
      %s53 = sadd.s32 %s52, 1
      %s54 = scalar_select %p51, %s52, %s53
      %p57 = pneg %p51
      %p58 = scmp.eq.s32.totalorder %s16, 3
      %p59 = por %p57, %p58
      %p60 = scmp.ne.s32.totalorder %s52, %s55
      %p61 = scmp.eq.s32.totalorder %s16, 0
      %p62 = por %p60, %p61
      %p63 = scmp.ne.s32.totalorder %s52, %s55
      %p64 = scmp.eq.s32.totalorder %s21, 3
      %p65 = por %p63, %p64
      %p66 = scmp.ne.s32.totalorder %s55, %s56
      %p67 = scmp.eq.s32.totalorder %s21, 0
      %p68 = por %p66, %p67
      %p69 = scmp.ne.s32.totalorder %s55, %s56
      %p70 = scmp.eq.s32.totalorder %s22, 3
      %p71 = por %p69, %p70
      %p73 = scmp.ne.s32.totalorder %s56, %s72
      %p74 = scmp.eq.s32.totalorder %s22, 0
      %p75 = por %p73, %p74
      %s77 = sadd.s32 %s76, 1
      %p80 = scmp.eq.s32.totalorder %s16, 3
      %p81 = scmp.ne.s32.totalorder %s76, %s78
      %p82 = scmp.eq.s32.totalorder %s16, 0
      %p83 = por %p81, %p82
      %p84 = scmp.ne.s32.totalorder %s76, %s78
      %p85 = scmp.eq.s32.totalorder %s21, 3
      %p86 = por %p84, %p85
      %p87 = scmp.ne.s32.totalorder %s78, %s79
      %p88 = scmp.eq.s32.totalorder %s21, 0
      %p89 = por %p87, %p88
      %p90 = scmp.ne.s32.totalorder %s78, %s79
      %p91 = scmp.eq.s32.totalorder %s22, 3
      %p92 = por %p90, %p91
      %p94 = scmp.ne.s32.totalorder %s79, %s93
      %p95 = scmp.eq.s32.totalorder %s22, 0
      %p96 = por %p94, %p95
      %s98 = sadd.s32 %s97, 1
      %p101 = scmp.eq.s32.totalorder %s16, 3
      %p102 = scmp.ne.s32.totalorder %s97, %s99
      %p103 = scmp.eq.s32.totalorder %s16, 0
      %p104 = por %p102, %p103
      %p105 = scmp.ne.s32.totalorder %s97, %s99
      %p106 = scmp.eq.s32.totalorder %s21, 3
      %p107 = por %p105, %p106
      %p108 = scmp.ne.s32.totalorder %s99, %s100
      %p109 = scmp.eq.s32.totalorder %s21, 0
      %p110 = por %p108, %p109
      %p111 = scmp.ne.s32.totalorder %s99, %s100
      %p112 = scmp.eq.s32.totalorder %s22, 3
      %p113 = por %p111, %p112
      %p115 = scmp.ne.s32.totalorder %s100, %s114
      %p116 = scmp.eq.s32.totalorder %s22, 0
      %p117 = por %p115, %p116
      %s118 = ssub.s32 %s16, %s23
      %p119 = scmp.eq.s32.totalorder %s118, 0
      %s121 = sadd.s32 %s120, 1
      %s122 = scalar_select %p119, %s120, %s121
      %p125 = pneg %p119
      %p126 = scmp.eq.s32.totalorder %s16, 3
      %p127 = por %p125, %p126
      %p128 = scmp.ne.s32.totalorder %s120, %s123
      %p129 = scmp.eq.s32.totalorder %s16, 0
      %p130 = por %p128, %p129
      %p131 = scmp.ne.s32.totalorder %s120, %s123
      %p132 = scmp.eq.s32.totalorder %s21, 3
      %p133 = por %p131, %p132
      %p134 = scmp.ne.s32.totalorder %s123, %s124
      %p135 = scmp.eq.s32.totalorder %s21, 0
      %p136 = por %p134, %p135
      %p137 = scmp.ne.s32.totalorder %s123, %s124
      %p138 = scmp.eq.s32.totalorder %s22, 3
      %p139 = por %p137, %p138
      %p141 = scmp.ne.s32.totalorder %s124, %s140
      %p142 = scmp.eq.s32.totalorder %s22, 0
      %p143 = por %p141, %p142
      %p144 = scmp.le.s32.totalorder 1, %s16
      %p145 = scmp.lt.s32.totalorder %s16, 5
      %p146 = pnand %p144, %p145
      %p147 = pneg %p146
      // Predicated region
      $region9: #{classifier_forward_prepared.1} parent=5 // pred_check
        _
      $region10: #{classifier_forward_prepared.1} parent=5 // pred_check_branch
        %149 = sbr.rel (%p146) target = $region12
      $region11: #{classifier_forward_prepared.1} parent=5 // pred_region
        %s150 = ssub.s32 %s16, 1
        // Predicated region
        $region13: #{classifier_forward_prepared.1} parent=11 // pred_check
          %p151 = pneg %p89
        $region14: #{classifier_forward_prepared.1} parent=11 // pred_check_branch
          %153 = sbr.rel (%p151) target = $region16
        $region15: #{classifier_forward_prepared.1} parent=11 // pred_region
          %s155 = ssub.s32 8192, 8192
          %156 = vsyncadd [#allocation5], %s155
          %s157 = sshll.u32 [#allocation6], 4
          %s158 = int_to_ptr.vmem [resolvable:$true] %s157
          %163 = dma.hbm_to_vmem [thread:$0]  %s2, 8192, %s158, [#allocation5], 128, 128, 8
        $region16: #{classifier_forward_prepared.1} parent=11 // pred_fallthru
          _
        // Predicated region
        $region17: #{classifier_forward_prepared.1} parent=11 // pred_check
          %p164 = pneg %p110
        $region18: #{classifier_forward_prepared.1} parent=11 // pred_check_branch
          %166 = sbr.rel (%p164) target = $region20
        $region19: #{classifier_forward_prepared.1} parent=11 // pred_region
          _
        $region20: #{classifier_forward_prepared.1} parent=11 // pred_fallthru
          _
      $region12: #{classifier_forward_prepared.1} parent=5 // pred_fallthru
        _
      %p167 = scmp.lt.s32.totalorder %s16, 4
      // Predicated region
      $region21: #{classifier_forward_prepared.1} parent=5 // pred_check
        %p168 = pneg %p167
      $region22: #{classifier_forward_prepared.1} parent=5 // pred_check_branch
        %170 = sbr.rel (%p168) target = $region24
      $region23: #{classifier_forward_prepared.1} parent=5 // pred_region
        // Predicated region
        $region25: #{classifier_forward_prepared.1} parent=23 // pred_check
          %p171 = pneg %p36
        $region26: #{classifier_forward_prepared.1} parent=23 // pred_check_branch
          %173 = sbr.rel (%p171) target = $region28
        $region27: #{classifier_forward_prepared.1} parent=23 // pred_region
          %s174 = sand.u32 %s26, 1
          %s175 = scalar_lea.sflag [#allocation3], %s174
          %s176 = sand.u32 %s26, 1
          %s177 = smul.addr %s176, 88
          %s178 = scalar_lea.vmem [#allocation2], %s177
          %s179 = smul.u32 11, %s16
          %s180 = ssub.s32 42, %s179
          %p181 = scmp.lt.s32.totalorder %s180, 11
          %s182 = scalar_select %p181, %s180, 11
          %s183 = smul.u32 128, %s182
          %s185 = ssub.s32 1408, %s183
          %186 = vsyncadd %s175, %s185
          %p187 = scmp.ne.s32.totalorder 0, %s183
          %s188 = smul.addr %s179, 128
          %s189 = scalar_lea.hbm %s0, %s188
          %s190 = smul.u32 8, %s182
          %s191 = sshll.u32 %s178, 4
          %s192 = int_to_ptr.vmem [resolvable:$true] %s191
          %s193 = sshll.u32 %s190, 4
          %197 = dma.hbm_to_vmem [thread:$0]  (%p187), %s189, %s193, %s192, %s175, 128, 128, 8
        $region28: #{classifier_forward_prepared.1} parent=23 // pred_fallthru
          _
        // Predicated region
        $region29: #{classifier_forward_prepared.1} parent=23 // pred_check
          %p198 = pneg %p62
        $region30: #{classifier_forward_prepared.1} parent=23 // pred_check_branch
          %200 = sbr.rel (%p198) target = $region32
        $region31: #{classifier_forward_prepared.1} parent=23 // pred_region
          %s201 = sand.u32 %s16, 1
          %s202 = scalar_lea.sflag [#allocation5], %s201
          %s203 = sand.u32 %s52, 1
          %s204 = smul.addr %s203, 88
          %s205 = scalar_lea.vmem [#allocation4], %s204
          %s206 = smul.u32 11, %s16
          %s207 = ssub.s32 42, %s206
          %p208 = scmp.lt.s32.totalorder %s207, 11
          %s209 = scalar_select %p208, %s207, 11
          %s210 = smul.u32 128, %s209
          %s212 = ssub.s32 1408, %s210
          %213 = vsyncadd %s202, %s212
          %p214 = scmp.ne.s32.totalorder 0, %s210
          %s215 = smul.addr %s206, 128
          %s216 = scalar_lea.hbm %s1, %s215
          %s217 = smul.u32 8, %s209
          %s218 = sshll.u32 %s205, 4
          %s219 = int_to_ptr.vmem [resolvable:$true] %s218
          %s220 = sshll.u32 %s217, 4
          %224 = dma.hbm_to_vmem [thread:$0]  (%p214), %s216, %s220, %s219, %s202, 128, 128, 8
        $region32: #{classifier_forward_prepared.1} parent=23 // pred_fallthru
          _
      $region24: #{classifier_forward_prepared.1} parent=5 // pred_fallthru
        _
      %p225 = scmp.le.s32.totalorder 1, %s16
      %p226 = scmp.lt.s32.totalorder %s16, 5
      %p227 = pnand %p225, %p226
      %p228 = pneg %p227
      // Predicated region
      $region33: #{classifier_forward_prepared.1} parent=5 // pred_check
        _
      $region34: #{classifier_forward_prepared.1} parent=5 // pred_check_branch
        %230 = sbr.rel (%p227) target = $region36
      $region35: #{classifier_forward_prepared.1} parent=5 // pred_region
        %s231 = ssub.s32 %s16, 1
        %s232 = sand.u32 %s29, 1
        %s233 = scalar_lea.sflag [#allocation3], %s232
        %s234 = sand.u32 %s29, 1
        %s235 = smul.addr %s234, 88
        %s236 = scalar_lea.vmem [#allocation2], %s235
        // Predicated region
        $region37: #{classifier_forward_prepared.1} parent=35 // pred_check
          %p237 = pneg %p42
        $region38: #{classifier_forward_prepared.1} parent=35 // pred_check_branch
          %239 = sbr.rel (%p237) target = $region40
        $region39: #{classifier_forward_prepared.1} parent=35 // pred_region
          %240 = dma.done %s233, 1408
        $region40: #{classifier_forward_prepared.1} parent=35 // pred_fallthru
          _
        %s241 = sand.u32 %s21, 1
        %s242 = scalar_lea.sflag [#allocation5], %s241
        %s243 = sand.u32 %s55, 1
        %s244 = smul.addr %s243, 88
        %s245 = scalar_lea.vmem [#allocation4], %s244
        // Predicated region
        $region41: #{classifier_forward_prepared.1} parent=35 // pred_check
          %p246 = pneg %p68
        $region42: #{classifier_forward_prepared.1} parent=35 // pred_check_branch
          %248 = sbr.rel (%p246) target = $region44
        $region43: #{classifier_forward_prepared.1} parent=35 // pred_region
          %249 = dma.done %s242, 1408
        $region44: #{classifier_forward_prepared.1} parent=35 // pred_fallthru
          _
        // Predicated region
        $region45: #{classifier_forward_prepared.1} parent=35 // pred_check
          %p250 = pneg %p89
        $region46: #{classifier_forward_prepared.1} parent=35 // pred_check_branch
          %252 = sbr.rel (%p250) target = $region48
        $region47: #{classifier_forward_prepared.1} parent=35 // pred_region
          %253 = dma.done [#allocation5], 8192
        $region48: #{classifier_forward_prepared.1} parent=35 // pred_fallthru
          _
        %s254 = sand.u32 %s29, 1
        %s255 = scalar_lea.sflag [#allocation3], %s254
        %s256 = sand.u32 %s29, 1
        %s257 = smul.addr %s256, 88
        %s258 = scalar_lea.vmem [#allocation2], %s257
        %p259 = pneg %p42
        %p260 = pneg %p39
        %s261 = sand.u32 %s21, 1
        %s262 = scalar_lea.sflag [#allocation5], %s261
        %s263 = sand.u32 %s55, 1
        %s264 = smul.addr %s263, 88
        %s265 = scalar_lea.vmem [#allocation4], %s264
        %p266 = pneg %p68
        %p267 = pneg %p65
        %p268 = pneg %p89
        %p269 = pneg %p86
        %p270 = pneg %p110
        %p271 = pneg %p107
        %p272 = pneg %p136
        %p273 = pneg %p133
        %s274 = sand.u32 %s123, 1
        %s275 = sand.u32 %s123, 1
        %s276 = smul.addr %s275, 88
        %s277 = scalar_lea.vmem [#allocation7], %s276
        %s278 = smul.u32 11, %s21
        %s279 = ssub.s32 42, %s278
        %p280 = scmp.lt.s32.totalorder %s279, 11
        %s281 = scalar_select %p280, %s279, 11
        %s282 = smul.u32 128, %s281
        %s283 = smul.u32 11, %s21
        %s284 = ssub.s32 42, %s283
        %p285 = scmp.lt.s32.totalorder %s284, 11
        %s286 = scalar_select %p285, %s284, 11
        %s287 = smul.u32 128, %s286
        %s288 = smul.u32 11, %s21
        %s289 = ssub.s32 42, %s288
        %p290 = scmp.lt.s32.totalorder %s289, 11
        %s291 = scalar_select %p290, %s289, 11
        %s292 = smul.u32 128, %s291
        %v293 = vld [vmem:[%s236] sm:$0xff]
        %v294 = vld [vmem:[%s236 + $0x8] sm:$0xff]
        %v295 = vld [vmem:[%s236 + $0x10] sm:$0xff]
        %v296 = vld [vmem:[%s236 + $0x18] sm:$0xff]
        %v297 = vld [vmem:[%s236 + $0x20] sm:$0xff]
        %v298 = vld [vmem:[%s236 + $0x28] sm:$0xff]
        %v299 = vld [vmem:[%s236 + $0x30] sm:$0xff]
        %v300 = vld [vmem:[%s236 + $0x38] sm:$0xff]
        %v301 = vld [vmem:[%s236 + $0x40] sm:$0xff]
        %v302 = vld [vmem:[%s236 + $0x48] sm:$0xff]
        %v303 = vld [vmem:[%s236 + $0x50] sm:$0xff]
        %v304 = vld [vmem:[%s245] sm:$0xff]
        %v305 = vld [vmem:[%s245 + $0x8] sm:$0xff]
        %v306 = vld [vmem:[%s245 + $0x10] sm:$0xff]
        %v307 = vld [vmem:[%s245 + $0x18] sm:$0xff]
        %v308 = vld [vmem:[%s245 + $0x20] sm:$0xff]
        %v309 = vld [vmem:[%s245 + $0x28] sm:$0xff]
        %v310 = vld [vmem:[%s245 + $0x30] sm:$0xff]
        %v311 = vld [vmem:[%s245 + $0x38] sm:$0xff]
        %v312 = vld [vmem:[%s245 + $0x40] sm:$0xff]
        %v313 = vld [vmem:[%s245 + $0x48] sm:$0xff]
        %v314 = vld [vmem:[%s245 + $0x50] sm:$0xff]
        %v315 = vsub.f32 %v293, %v304
        %v316 = vsub.f32 %v294, %v305
        %v317 = vsub.f32 %v295, %v306
        %v318 = vsub.f32 %v296, %v307
        %v319 = vsub.f32 %v297, %v308
        %v320 = vsub.f32 %v298, %v309
        %v321 = vsub.f32 %v299, %v310
        %v322 = vsub.f32 %v300, %v311
        %v323 = vsub.f32 %v301, %v312
        %v324 = vsub.f32 %v302, %v313
        %v325 = vsub.f32 %v303, %v314
        %v326 = vand.u32 2147483647, %v315
        %v327 = vand.u32 2147483647, %v316
        %v328 = vand.u32 2147483647, %v317
        %v329 = vand.u32 2147483647, %v318
        %v330 = vand.u32 2147483647, %v319
        %v331 = vand.u32 2147483647, %v320
        %v332 = vand.u32 2147483647, %v321
        %v333 = vand.u32 2147483647, %v322
        %v334 = vand.u32 2147483647, %v323
        %v335 = vand.u32 2147483647, %v324
        %v336 = vand.u32 2147483647, %v325
        %v337 = vmul.f32 %v293, %v304
        %v338 = vmul.f32 %v294, %v305
        %v339 = vmul.f32 %v295, %v306
        %v340 = vmul.f32 %v296, %v307
        %v341 = vmul.f32 %v297, %v308
        %v342 = vmul.f32 %v298, %v309
        %v343 = vmul.f32 %v299, %v310
        %v344 = vmul.f32 %v300, %v311
        %v345 = vmul.f32 %v301, %v312
        %v346 = vmul.f32 %v302, %v313
        %v347 = vmul.f32 %v303, %v314
        %v348 = vld [vmem:[#allocation6] sm:$0xff]
        %v349 = vld [vmem:[#allocation6 + $0x8] sm:$0xff]
        %v350 = vld [vmem:[#allocation6 + $0x10] sm:$0xff]
        %v351 = vld [vmem:[#allocation6 + $0x18] sm:$0xff]
        %v352 = vld [vmem:[#allocation6 + $0x20] sm:$0xff]
        %v353 = vld [vmem:[#allocation6 + $0x28] sm:$0xff]
        %v354 = vld [vmem:[#allocation6 + $0x30] sm:$0xff]
        %v355 = vld [vmem:[#allocation6 + $0x38] sm:$0xff]
        %v356 = vld [vmem:[#allocation6 + $0x40] sm:$0xff]
        %v357 = vld [vmem:[#allocation6 + $0x48] sm:$0xff]
        %v358 = vld [vmem:[#allocation6 + $0x50] sm:$0xff]
        %v359 = vld [vmem:[#allocation6 + $0x58] sm:$0xff]
        %v360 = vld [vmem:[#allocation6 + $0x60] sm:$0xff]
        %v361 = vld [vmem:[#allocation6 + $0x68] sm:$0xff]
        %v362 = vld [vmem:[#allocation6 + $0x70] sm:$0xff]
        %v363 = vld [vmem:[#allocation6 + $0x78] sm:$0xff]
        %v364 = vld [vmem:[#allocation6 + $0x80] sm:$0xff]
        %v365 = vld [vmem:[#allocation6 + $0x88] sm:$0xff]
        %v366 = vld [vmem:[#allocation6 + $0x90] sm:$0xff]
        %v367 = vld [vmem:[#allocation6 + $0x98] sm:$0xff]
        %v368 = vld [vmem:[#allocation6 + $0xa0] sm:$0xff]
        %v369 = vld [vmem:[#allocation6 + $0xa8] sm:$0xff]
        %v370 = vld [vmem:[#allocation6 + $0xb0] sm:$0xff]
        %v371 = vld [vmem:[#allocation6 + $0xb8] sm:$0xff]
        %v372 = vld [vmem:[#allocation6 + $0xc0] sm:$0xff]
        %v373 = vld [vmem:[#allocation6 + $0xc8] sm:$0xff]
        %v374 = vld [vmem:[#allocation6 + $0xd0] sm:$0xff]
        %v375 = vld [vmem:[#allocation6 + $0xd8] sm:$0xff]
        %v376 = vld [vmem:[#allocation6 + $0xe0] sm:$0xff]
        %v377 = vld [vmem:[#allocation6 + $0xe8] sm:$0xff]
        %v378 = vld [vmem:[#allocation6 + $0xf0] sm:$0xff]
        %v379 = vld [vmem:[#allocation6 + $0xf8] sm:$0xff]
        %v380 = vld [vmem:[#allocation6 + $0x100] sm:$0xff]
        %v381 = vld [vmem:[#allocation6 + $0x108] sm:$0xff]
        %v382 = vld [vmem:[#allocation6 + $0x110] sm:$0xff]
        %v383 = vld [vmem:[#allocation6 + $0x118] sm:$0xff]
        %v384 = vld [vmem:[#allocation6 + $0x120] sm:$0xff]
        %v385 = vld [vmem:[#allocation6 + $0x128] sm:$0xff]
        %v386 = vld [vmem:[#allocation6 + $0x130] sm:$0xff]
        %v387 = vld [vmem:[#allocation6 + $0x138] sm:$0xff]
        %v388 = vld [vmem:[#allocation6 + $0x140] sm:$0xff]
        %v389 = vld [vmem:[#allocation6 + $0x148] sm:$0xff]
        %v390 = vld [vmem:[#allocation6 + $0x150] sm:$0xff]
        %v391 = vld [vmem:[#allocation6 + $0x158] sm:$0xff]
        %v392 = vld [vmem:[#allocation6 + $0x160] sm:$0xff]
        %v393 = vld [vmem:[#allocation6 + $0x168] sm:$0xff]
        %v394 = vld [vmem:[#allocation6 + $0x170] sm:$0xff]
        %v395 = vld [vmem:[#allocation6 + $0x178] sm:$0xff]
        %v396 = vld [vmem:[#allocation6 + $0x180] sm:$0xff]
        %v397 = vld [vmem:[#allocation6 + $0x188] sm:$0xff]
        %v398 = vld [vmem:[#allocation6 + $0x190] sm:$0xff]
        %v399 = vld [vmem:[#allocation6 + $0x198] sm:$0xff]
        %v400 = vld [vmem:[#allocation6 + $0x1a0] sm:$0xff]
        %v401 = vld [vmem:[#allocation6 + $0x1a8] sm:$0xff]
        %v402 = vld [vmem:[#allocation6 + $0x1b0] sm:$0xff]
        %v403 = vld [vmem:[#allocation6 + $0x1b8] sm:$0xff]
        %v404 = vld [vmem:[#allocation6 + $0x1c0] sm:$0xff]
        %v405 = vld [vmem:[#allocation6 + $0x1c8] sm:$0xff]
        %v406 = vld [vmem:[#allocation6 + $0x1d0] sm:$0xff]
        %v407 = vld [vmem:[#allocation6 + $0x1d8] sm:$0xff]
        %v408 = vld [vmem:[#allocation6 + $0x1e0] sm:$0xff]
        %v409 = vld [vmem:[#allocation6 + $0x1e8] sm:$0xff]
        %v410 = vld [vmem:[#allocation6 + $0x1f0] sm:$0xff]
        %v411 = vld [vmem:[#allocation6 + $0x1f8] sm:$0xff]
        %v412 = vld [vmem:[%s3] sm:$0x1]
        %v414 = vlaneseq
        %v415 = vshrl.u32 %v414, 7
        %v416 = vsub.s32 0, %v415
        %v417 = vrot.slane %v412, %v416
        %419 = vmatprep.subr.mxu0 0.0
        %420 = vmatpush1.msra.mxu0 %v348
        %421 = vmatprep.subr.mxu0 0.0
        %422 = vmatpush1.msra.mxu0 %v349
        %423 = vmatprep.subr.mxu0 0.0
        %424 = vmatpush1.msra.mxu0 %v350
        %425 = vmatprep.subr.mxu0 0.0
        %426 = vmatpush1.msra.mxu0 %v351
        %427 = vmatprep.subr.mxu0 0.0
        %428 = vmatpush1.msra.mxu0 %v352
        %429 = vmatprep.subr.mxu0 0.0
        %430 = vmatpush1.msra.mxu0 %v353
        %431 = vmatprep.subr.mxu0 0.0
        %432 = vmatpush1.msra.mxu0 %v354
        %433 = vmatprep.subr.mxu0 0.0
        %434 = vmatpush1.msra.mxu0 %v355
        %435 = vmatprep.subr.mxu0 0.0
        %436 = vmatpush1.msra.mxu0 %v356
        %437 = vmatprep.subr.mxu0 0.0
        %438 = vmatpush1.msra.mxu0 %v357
        %439 = vmatprep.subr.mxu0 0.0
        %440 = vmatpush1.msra.mxu0 %v358
        %441 = vmatprep.subr.mxu0 0.0
        %442 = vmatpush1.msra.mxu0 %v359
        %443 = vmatprep.subr.mxu0 0.0
        %444 = vmatpush1.msra.mxu0 %v360
        %445 = vmatprep.subr.mxu0 0.0
        %446 = vmatpush1.msra.mxu0 %v361
        %447 = vmatprep.subr.mxu0 0.0
        %448 = vmatpush1.msra.mxu0 %v362
        %449 = vmatprep.subr.mxu0 0.0
        %450 = vmatpush1.msra.mxu0 %v363
        %451 = vmatprep.subr.mxu0 0.0
        %452 = vmatpush1.msra.mxu0 %v364
        %453 = vmatprep.subr.mxu0 0.0
        %454 = vmatpush1.msra.mxu0 %v365
        %455 = vmatprep.subr.mxu0 0.0
        %456 = vmatpush1.msra.mxu0 %v366
        %457 = vmatprep.subr.mxu0 0.0
        %458 = vmatpush1.msra.mxu0 %v367
        %459 = vmatprep.subr.mxu0 0.0
        %460 = vmatpush1.msra.mxu0 %v368
        %461 = vmatprep.subr.mxu0 0.0
        %462 = vmatpush1.msra.mxu0 %v369
        %463 = vmatprep.subr.mxu0 0.0
        %464 = vmatpush1.msra.mxu0 %v370
        %465 = vmatprep.subr.mxu0 0.0
        %466 = vmatpush1.msra.mxu0 %v371
        %467 = vmatprep.subr.mxu0 0.0
        %468 = vmatpush1.msra.mxu0 %v372
        %469 = vmatprep.subr.mxu0 0.0
        %470 = vmatpush1.msra.mxu0 %v373
        %471 = vmatprep.subr.mxu0 0.0
        %472 = vmatpush1.msra.mxu0 %v374
        %473 = vmatprep.subr.mxu0 0.0
        %474 = vmatpush1.msra.mxu0 %v375
        %475 = vmatprep.subr.mxu0 0.0
        %476 = vmatpush1.msra.mxu0 %v376
        %477 = vmatprep.subr.mxu0 0.0
        %478 = vmatpush1.msra.mxu0 %v377
        %479 = vmatprep.subr.mxu0 0.0
        %480 = vmatpush1.msra.mxu0 %v378
        %481 = vmatprep.subr.mxu0 0.0
        %482 = vmatpush1.msra.mxu0 %v379
        %483 = vmatprep.mubr.f32.mxu0 %v304
        %484 = vmatmul.mubr.f32.gmra.mrb[0].mxu0 %v293
        %v485 = vpop.f32.mrb[0].mxu0
        %v486 = vadd.f32 %v417, %v485
        %v487 = vpop.f32.mrb[0].mxu0
        %488 = vmatprep.mubr.f32.mxu0 %v305
        %489 = vmatmul.mubr.f32.gmra.mrb[0].mxu0 %v294
        %v490 = vpop.f32.mrb[0].mxu0
        %v491 = vadd.f32 %v417, %v490
        %v492 = vpop.f32.mrb[0].mxu0
        %493 = vmatprep.mubr.f32.mxu0 %v306
        %494 = vmatmul.mubr.f32.gmra.mrb[0].mxu0 %v295
        %v495 = vpop.f32.mrb[0].mxu0
        %v496 = vadd.f32 %v417, %v495
        %v497 = vpop.f32.mrb[0].mxu0
        %498 = vmatprep.mubr.f32.mxu0 %v307
        %499 = vmatmul.mubr.f32.gmra.mrb[0].mxu0 %v296
        %v500 = vpop.f32.mrb[0].mxu0
        %v501 = vadd.f32 %v417, %v500
        %v502 = vpop.f32.mrb[0].mxu0
        %503 = vmatprep.mubr.f32.mxu0 %v308
        %504 = vmatmul.mubr.f32.gmra.mrb[0].mxu0 %v297
        %v505 = vpop.f32.mrb[0].mxu0
        %v506 = vadd.f32 %v417, %v505
        %v507 = vpop.f32.mrb[0].mxu0
        %508 = vmatprep.mubr.f32.mxu0 %v309
        %509 = vmatmul.mubr.f32.gmra.mrb[0].mxu0 %v298
        %v510 = vpop.f32.mrb[0].mxu0
        %v511 = vadd.f32 %v417, %v510
        %v512 = vpop.f32.mrb[0].mxu0
        %513 = vmatprep.mubr.f32.mxu0 %v310
        %514 = vmatmul.mubr.f32.gmra.mrb[0].mxu0 %v299
        %v515 = vpop.f32.mrb[0].mxu0
        %v516 = vadd.f32 %v417, %v515
        %v517 = vpop.f32.mrb[0].mxu0
        %518 = vmatprep.mubr.f32.mxu0 %v311
        %519 = vmatmul.mubr.f32.gmra.mrb[0].mxu0 %v300
        %v520 = vpop.f32.mrb[0].mxu0
        %v521 = vadd.f32 %v417, %v520
        %v522 = vpop.f32.mrb[0].mxu0
        %523 = vmatprep.mubr.f32.mxu0 %v312
        %524 = vmatmul.mubr.f32.gmra.mrb[0].mxu0 %v301
        %v525 = vpop.f32.mrb[0].mxu0
        %v526 = vadd.f32 %v417, %v525
        %v527 = vpop.f32.mrb[0].mxu0
        %528 = vmatprep.mubr.f32.mxu0 %v313
        %529 = vmatmul.mubr.f32.gmra.mrb[0].mxu0 %v302
        %v530 = vpop.f32.mrb[0].mxu0
        %v531 = vadd.f32 %v417, %v530
        %v532 = vpop.f32.mrb[0].mxu0
        %533 = vmatprep.mubr.f32.mxu0 %v314
        %534 = vmatmul.mubr.f32.gmra.mrb[0].mxu0 %v303
        %v535 = vpop.f32.mrb[0].mxu0
        %v536 = vadd.f32 %v417, %v535
        %v537 = vpop.f32.mrb[0].mxu0
        %538 = vdwg.mxu0
        %539 = vmatprep.subr.mxu0 0.0
        %540 = vmatpush1.msra.mxu0 %v380
        %541 = vmatprep.subr.mxu0 0.0
        %542 = vmatpush1.msra.mxu0 %v381
        %543 = vmatprep.subr.mxu0 0.0
        %544 = vmatpush1.msra.mxu0 %v382
        %545 = vmatprep.subr.mxu0 0.0
        %546 = vmatpush1.msra.mxu0 %v383
        %547 = vmatprep.subr.mxu0 0.0
        %548 = vmatpush1.msra.mxu0 %v384
        %549 = vmatprep.subr.mxu0 0.0
        %550 = vmatpush1.msra.mxu0 %v385
        %551 = vmatprep.subr.mxu0 0.0
        %552 = vmatpush1.msra.mxu0 %v386
        %553 = vmatprep.subr.mxu0 0.0
        %554 = vmatpush1.msra.mxu0 %v387
        %555 = vmatprep.subr.mxu0 0.0
        %556 = vmatpush1.msra.mxu0 %v388
        %557 = vmatprep.subr.mxu0 0.0
        %558 = vmatpush1.msra.mxu0 %v389
        %559 = vmatprep.subr.mxu0 0.0
        %560 = vmatpush1.msra.mxu0 %v390
        %561 = vmatprep.subr.mxu0 0.0
        %562 = vmatpush1.msra.mxu0 %v391
        %563 = vmatprep.subr.mxu0 0.0
        %564 = vmatpush1.msra.mxu0 %v392
        %565 = vmatprep.subr.mxu0 0.0
        %566 = vmatpush1.msra.mxu0 %v393
        %567 = vmatprep.subr.mxu0 0.0
        %568 = vmatpush1.msra.mxu0 %v394
        %569 = vmatprep.subr.mxu0 0.0
        %570 = vmatpush1.msra.mxu0 %v395
        %571 = vmatprep.subr.mxu0 0.0
        %572 = vmatpush1.msra.mxu0 %v396
        %573 = vmatprep.subr.mxu0 0.0
        %574 = vmatpush1.msra.mxu0 %v397
        %575 = vmatprep.subr.mxu0 0.0
        %576 = vmatpush1.msra.mxu0 %v398
        %577 = vmatprep.subr.mxu0 0.0
        %578 = vmatpush1.msra.mxu0 %v399
        %579 = vmatprep.subr.mxu0 0.0
        %580 = vmatpush1.msra.mxu0 %v400
        %581 = vmatprep.subr.mxu0 0.0
        %582 = vmatpush1.msra.mxu0 %v401
        %583 = vmatprep.subr.mxu0 0.0
        %584 = vmatpush1.msra.mxu0 %v402
        %585 = vmatprep.subr.mxu0 0.0
        %586 = vmatpush1.msra.mxu0 %v403
        %587 = vmatprep.subr.mxu0 0.0
        %588 = vmatpush1.msra.mxu0 %v404
        %589 = vmatprep.subr.mxu0 0.0
        %590 = vmatpush1.msra.mxu0 %v405
        %591 = vmatprep.subr.mxu0 0.0
        %592 = vmatpush1.msra.mxu0 %v406
        %593 = vmatprep.subr.mxu0 0.0
        %594 = vmatpush1.msra.mxu0 %v407
        %595 = vmatprep.subr.mxu0 0.0
        %596 = vmatpush1.msra.mxu0 %v408
        %597 = vmatprep.subr.mxu0 0.0
        %598 = vmatpush1.msra.mxu0 %v409
        %599 = vmatprep.subr.mxu0 0.0
        %600 = vmatpush1.msra.mxu0 %v410
        %601 = vmatprep.subr.mxu0 0.0
        %602 = vmatpush1.msra.mxu0 %v411
        %603 = vmatprep.mubr.f32.mxu0 %v337
        %604 = vmatmul.mubr.f32.gmra.mrb[0].mxu0 %v326
        %v605 = vpop.f32.mrb[0].mxu0
        %v606 = vadd.f32 %v486, %v605
        %v607 = vpop.f32.mrb[0].mxu0
        %608 = vmatprep.mubr.f32.mxu0 %v338
        %609 = vmatmul.mubr.f32.gmra.mrb[0].mxu0 %v327
        %v610 = vpop.f32.mrb[0].mxu0
        %v611 = vadd.f32 %v491, %v610
        %v612 = vpop.f32.mrb[0].mxu0
        %613 = vmatprep.mubr.f32.mxu0 %v339
        %614 = vmatmul.mubr.f32.gmra.mrb[0].mxu0 %v328
        %v615 = vpop.f32.mrb[0].mxu0
        %v616 = vadd.f32 %v496, %v615
        %v617 = vpop.f32.mrb[0].mxu0
        %618 = vmatprep.mubr.f32.mxu0 %v340
        %619 = vmatmul.mubr.f32.gmra.mrb[0].mxu0 %v329
        %v620 = vpop.f32.mrb[0].mxu0
        %v621 = vadd.f32 %v501, %v620
        %v622 = vpop.f32.mrb[0].mxu0
        %623 = vmatprep.mubr.f32.mxu0 %v341
        %624 = vmatmul.mubr.f32.gmra.mrb[0].mxu0 %v330
        %v625 = vpop.f32.mrb[0].mxu0
        %v626 = vadd.f32 %v506, %v625
        %v627 = vpop.f32.mrb[0].mxu0
        %628 = vmatprep.mubr.f32.mxu0 %v342
        %629 = vmatmul.mubr.f32.gmra.mrb[0].mxu0 %v331
        %v630 = vpop.f32.mrb[0].mxu0
        %v631 = vadd.f32 %v511, %v630
        %v632 = vpop.f32.mrb[0].mxu0
        %633 = vmatprep.mubr.f32.mxu0 %v343
        %634 = vmatmul.mubr.f32.gmra.mrb[0].mxu0 %v332
        %v635 = vpop.f32.mrb[0].mxu0
        %v636 = vadd.f32 %v516, %v635
        %v637 = vpop.f32.mrb[0].mxu0
        %638 = vmatprep.mubr.f32.mxu0 %v344
        %639 = vmatmul.mubr.f32.gmra.mrb[0].mxu0 %v333
        %v640 = vpop.f32.mrb[0].mxu0
        %v641 = vadd.f32 %v521, %v640
        %v642 = vpop.f32.mrb[0].mxu0
        %643 = vmatprep.mubr.f32.mxu0 %v345
        %644 = vmatmul.mubr.f32.gmra.mrb[0].mxu0 %v334
        %v645 = vpop.f32.mrb[0].mxu0
        %v646 = vadd.f32 %v526, %v645
        %v647 = vpop.f32.mrb[0].mxu0
        %648 = vmatprep.mubr.f32.mxu0 %v346
        %649 = vmatmul.mubr.f32.gmra.mrb[0].mxu0 %v335
        %v650 = vpop.f32.mrb[0].mxu0
        %v651 = vadd.f32 %v531, %v650
        %v652 = vpop.f32.mrb[0].mxu0
        %653 = vmatprep.mubr.f32.mxu0 %v347
        %654 = vmatmul.mubr.f32.gmra.mrb[0].mxu0 %v336
        %v655 = vpop.f32.mrb[0].mxu0
        %v656 = vadd.f32 %v536, %v655
        %v657 = vpop.f32.mrb[0].mxu0
        %658 = vdwg.mxu0
        %659 = vst [vmem:[%s277] sm:$0xff] %v606
        %660 = vst [vmem:[%s277 + $0x8] sm:$0xff] %v611
        %661 = vst [vmem:[%s277 + $0x10] sm:$0xff] %v616
        %662 = vst [vmem:[%s277 + $0x18] sm:$0xff] %v621
        %663 = vst [vmem:[%s277 + $0x20] sm:$0xff] %v626
        %664 = vst [vmem:[%s277 + $0x28] sm:$0xff] %v631
        %665 = vst [vmem:[%s277 + $0x30] sm:$0xff] %v636
        %666 = vst [vmem:[%s277 + $0x38] sm:$0xff] %v641
        %667 = vst [vmem:[%s277 + $0x40] sm:$0xff] %v646
        %668 = vst [vmem:[%s277 + $0x48] sm:$0xff] %v651
        %669 = vst [vmem:[%s277 + $0x50] sm:$0xff] %v656
        %s670 = sand.u32 %s123, 1
        %s671 = sand.u32 %s123, 1
        %s672 = smul.addr %s671, 88
        %s673 = scalar_lea.vmem [#allocation7], %s672
        // Predicated region
        $region49: #{classifier_forward_prepared.1} parent=35 // pred_check
          %p674 = pneg %p133
        $region50: #{classifier_forward_prepared.1} parent=35 // pred_check_branch
          %676 = sbr.rel (%p674) target = $region52
        $region51: #{classifier_forward_prepared.1} parent=35 // pred_region
          %s677 = smul.u32 11, %s21
          %s678 = ssub.s32 42, %s677
          %p679 = scmp.lt.s32.totalorder %s678, 11
          %s680 = scalar_select %p679, %s678, 11
          %s681 = smul.u32 128, %s680
          %p682 = scmp.ne.s32.totalorder 0, %s681
          %s683 = smul.addr %s677, 8
          %s684 = scalar_lea.vmem %s4, %s683
          // Predicated region
          $region53: #{classifier_forward_prepared.1} parent=51 // pred_check
            %p685 = pneg %p682
          $region54: #{classifier_forward_prepared.1} parent=51 // pred_check_branch
            %687 = sbr.rel (%p685) target = $region56
          $region55: #{classifier_forward_prepared.1} parent=51 // pred_region
            // Predicated region
            $region57: #{classifier_forward_prepared.1} parent=55 // pred_check
              _
            $region58: #{classifier_forward_prepared.1} parent=55 // pred_check_branch
              %689 = sbr.rel (0) target = $region60
            $region59: #{classifier_forward_prepared.1} parent=55 // pred_region
              // Predicated region
              $region79: #{classifier_forward_prepared.1} parent=59 // pred_check
                _
              $region80: #{classifier_forward_prepared.1} parent=59 // pred_check_branch
                %759 = sbr.rel (0) target = $region82
              $region81: #{classifier_forward_prepared.1} parent=59 // pred_region
                %s760 = sdiv.u32.pop %s680, 11
                %s761 = srem.u32.pop %s680, 11
                // While loop
                $region83: #{classifier_forward_prepared.1} parent=81 // loop_pre_header
                  _
                $region84: #{classifier_forward_prepared.1} parent=81 // loop_header
                  %s763 = sphi 0, %s765
                  %p764 = scmp.ge.s32.totalorder %s763, %s760
                  %s768 = sphi 0, %s795
                  %s769 = sphi %s673, %s798
                  %s770 = sphi %s684, %s799
                $region85: #{classifier_forward_prepared.1} parent=81 // loop_header_branch
                  %767 = sbr.rel (%p764) target = $region89
                $region86: #{classifier_forward_prepared.1} parent=81 // loop_body
                  %v771 = vld [vmem:[%s769] sm:$0xff]
                  %772 = vst [vmem:[%s770] sm:$0xff] %v771
                  %v773 = vld [vmem:[%s769 + $0x8] sm:$0xff]
                  %774 = vst [vmem:[%s770 + $0x8] sm:$0xff] %v773
                  %v775 = vld [vmem:[%s769 + $0x10] sm:$0xff]
                  %776 = vst [vmem:[%s770 + $0x10] sm:$0xff] %v775
                  %v777 = vld [vmem:[%s769 + $0x18] sm:$0xff]
                  %778 = vst [vmem:[%s770 + $0x18] sm:$0xff] %v777
                  %v779 = vld [vmem:[%s769 + $0x20] sm:$0xff]
                  %780 = vst [vmem:[%s770 + $0x20] sm:$0xff] %v779
                  %v781 = vld [vmem:[%s769 + $0x28] sm:$0xff]
                  %782 = vst [vmem:[%s770 + $0x28] sm:$0xff] %v781
                  %v783 = vld [vmem:[%s769 + $0x30] sm:$0xff]
                  %784 = vst [vmem:[%s770 + $0x30] sm:$0xff] %v783
                  %v785 = vld [vmem:[%s769 + $0x38] sm:$0xff]
                  %786 = vst [vmem:[%s770 + $0x38] sm:$0xff] %v785
                  %v787 = vld [vmem:[%s769 + $0x40] sm:$0xff]
                  %788 = vst [vmem:[%s770 + $0x40] sm:$0xff] %v787
                  %v789 = vld [vmem:[%s769 + $0x48] sm:$0xff]
                  %790 = vst [vmem:[%s770 + $0x48] sm:$0xff] %v789
                  %v791 = vld [vmem:[%s769 + $0x50] sm:$0xff]
                  %792 = vst [vmem:[%s770 + $0x50] sm:$0xff] %v791
                  %s793 = sadd.s32 1, %s768
                  %p794 = scmp.ge.s32.totalorder %s793, %s760
                  %s795 = scalar_select %p794, 0, %s793
                  %s796 = smul.u32 %s795, 88
                  %s797 = smul.u32 %s795, 88
                  %s798 = scalar_lea.vmem %s673, %s796 [#allocation7]
                  %s799 = scalar_lea.vmem %s684, %s797
                $region87: #{classifier_forward_prepared.1} parent=81 // loop_footer
                  %s765 = sadd.s32 %s763, 1
                $region88: #{classifier_forward_prepared.1} parent=81 // loop_footer_branch
                  %762 = sbr.rel target = $region84
                $region89: #{classifier_forward_prepared.1} parent=81 // loop_exit
                  _
                %s800 = sdiv.u32.pop %s680, 11
                %s801 = srem.u32.pop %s680, 11
                %s802 = smul.u32 %s800, 11
                %s803 = smul.u32 8, %s802
                %s804 = scalar_lea.vmem %s673, %s803 [#allocation7]
                %s805 = smul.u32 8, %s802
                %s806 = scalar_lea.vmem %s684, %s805
                // While loop
                $region90: #{classifier_forward_prepared.1} parent=81 // loop_pre_header
                  _
                $region91: #{classifier_forward_prepared.1} parent=81 // loop_header
                  %s808 = sphi 0, %s810
                  %p809 = scmp.ge.s32.totalorder %s808, %s801
                  %s813 = sphi 0, %s820
                  %s814 = sphi %s804, %s823
                  %s815 = sphi %s806, %s824
                $region92: #{classifier_forward_prepared.1} parent=81 // loop_header_branch
                  %812 = sbr.rel (%p809) target = $region96
                $region93: #{classifier_forward_prepared.1} parent=81 // loop_body
                  %v816 = vld [vmem:[%s814] sm:$0xff]
                  %817 = vst [vmem:[%s815] sm:$0xff] %v816
                  %s818 = sadd.s32 1, %s813
                  %p819 = scmp.ge.s32.totalorder %s818, %s801
                  %s820 = scalar_select %p819, 0, %s818
                  %s821 = smul.u32 %s820, 8
                  %s822 = smul.u32 %s820, 8
                  %s823 = scalar_lea.vmem %s804, %s821 [#allocation7]
                  %s824 = scalar_lea.vmem %s806, %s822
                $region94: #{classifier_forward_prepared.1} parent=81 // loop_footer
                  %s810 = sadd.s32 %s808, 1
                $region95: #{classifier_forward_prepared.1} parent=81 // loop_footer_branch
                  %807 = sbr.rel target = $region91
                $region96: #{classifier_forward_prepared.1} parent=81 // loop_exit
                  _
              $region82: #{classifier_forward_prepared.1} parent=59 // pred_fallthru
                _
              // Predicated region
              $region97: #{classifier_forward_prepared.1} parent=59 // pred_check
                _
              $region98: #{classifier_forward_prepared.1} parent=59 // pred_check_branch
                %826 = sbr.rel target = $region100
              $region99: #{classifier_forward_prepared.1} parent=59 // pred_region
                _
              $region100: #{classifier_forward_prepared.1} parent=59 // pred_fallthru
                _
            $region60: #{classifier_forward_prepared.1} parent=55 // pred_fallthru
              _
            // Predicated region
            $region61: #{classifier_forward_prepared.1} parent=55 // pred_check
              _
            $region62: #{classifier_forward_prepared.1} parent=55 // pred_check_branch
              %691 = sbr.rel target = $region64
            $region63: #{classifier_forward_prepared.1} parent=55 // pred_region
              %s693 = sdiv.u32.pop %s680, 11
              %s694 = srem.u32.pop %s680, 11
              // While loop
              $region65: #{classifier_forward_prepared.1} parent=63 // loop_pre_header
                _
              $region66: #{classifier_forward_prepared.1} parent=63 // loop_header
                %s696 = sphi 0, %s698
                %p697 = scmp.ge.s32.totalorder %s696, %s693
                %s701 = sphi 0, %s728
                %s702 = sphi %s673, %s731
                %s703 = sphi %s684, %s732
              $region67: #{classifier_forward_prepared.1} parent=63 // loop_header_branch
                %700 = sbr.rel (%p697) target = $region71
              $region68: #{classifier_forward_prepared.1} parent=63 // loop_body
                %v704 = vld [vmem:[%s702] sm:$0xff]
                %705 = vst [vmem:[%s703] sm:$0xff] %v704
                %v706 = vld [vmem:[%s702 + $0x8] sm:$0xff]
                %707 = vst [vmem:[%s703 + $0x8] sm:$0xff] %v706
                %v708 = vld [vmem:[%s702 + $0x10] sm:$0xff]
                %709 = vst [vmem:[%s703 + $0x10] sm:$0xff] %v708
                %v710 = vld [vmem:[%s702 + $0x18] sm:$0xff]
                %711 = vst [vmem:[%s703 + $0x18] sm:$0xff] %v710
                %v712 = vld [vmem:[%s702 + $0x20] sm:$0xff]
                %713 = vst [vmem:[%s703 + $0x20] sm:$0xff] %v712
                %v714 = vld [vmem:[%s702 + $0x28] sm:$0xff]
                %715 = vst [vmem:[%s703 + $0x28] sm:$0xff] %v714
                %v716 = vld [vmem:[%s702 + $0x30] sm:$0xff]
                %717 = vst [vmem:[%s703 + $0x30] sm:$0xff] %v716
                %v718 = vld [vmem:[%s702 + $0x38] sm:$0xff]
                %719 = vst [vmem:[%s703 + $0x38] sm:$0xff] %v718
                %v720 = vld [vmem:[%s702 + $0x40] sm:$0xff]
                %721 = vst [vmem:[%s703 + $0x40] sm:$0xff] %v720
                %v722 = vld [vmem:[%s702 + $0x48] sm:$0xff]
                %723 = vst [vmem:[%s703 + $0x48] sm:$0xff] %v722
                %v724 = vld [vmem:[%s702 + $0x50] sm:$0xff]
                %725 = vst [vmem:[%s703 + $0x50] sm:$0xff] %v724
                %s726 = sadd.s32 1, %s701
                %p727 = scmp.ge.s32.totalorder %s726, %s693
                %s728 = scalar_select %p727, 0, %s726
                %s729 = smul.u32 %s728, 88
                %s730 = smul.u32 %s728, 88
                %s731 = scalar_lea.vmem %s673, %s729 [#allocation7]
                %s732 = scalar_lea.vmem %s684, %s730
              $region69: #{classifier_forward_prepared.1} parent=63 // loop_footer
                %s698 = sadd.s32 %s696, 1
              $region70: #{classifier_forward_prepared.1} parent=63 // loop_footer_branch
                %695 = sbr.rel target = $region66
              $region71: #{classifier_forward_prepared.1} parent=63 // loop_exit
                _
              %s733 = sdiv.u32.pop %s680, 11
              %s734 = srem.u32.pop %s680, 11
              %s735 = smul.u32 %s733, 11
              %s736 = smul.u32 8, %s735
              %s737 = scalar_lea.vmem %s673, %s736 [#allocation7]
              %s738 = smul.u32 8, %s735
              %s739 = scalar_lea.vmem %s684, %s738
              // While loop
              $region72: #{classifier_forward_prepared.1} parent=63 // loop_pre_header
                _
              $region73: #{classifier_forward_prepared.1} parent=63 // loop_header
                %s741 = sphi 0, %s743
                %p742 = scmp.ge.s32.totalorder %s741, %s734
                %s746 = sphi 0, %s753
                %s747 = sphi %s737, %s756
                %s748 = sphi %s739, %s757
              $region74: #{classifier_forward_prepared.1} parent=63 // loop_header_branch
                %745 = sbr.rel (%p742) target = $region78
              $region75: #{classifier_forward_prepared.1} parent=63 // loop_body
                %v749 = vld [vmem:[%s747] sm:$0xff]
                %750 = vst [vmem:[%s748] sm:$0xff] %v749
                %s751 = sadd.s32 1, %s746
                %p752 = scmp.ge.s32.totalorder %s751, %s734
                %s753 = scalar_select %p752, 0, %s751
                %s754 = smul.u32 %s753, 8
                %s755 = smul.u32 %s753, 8
                %s756 = scalar_lea.vmem %s737, %s754 [#allocation7]
                %s757 = scalar_lea.vmem %s739, %s755
              $region76: #{classifier_forward_prepared.1} parent=63 // loop_footer
                %s743 = sadd.s32 %s741, 1
              $region77: #{classifier_forward_prepared.1} parent=63 // loop_footer_branch
                %740 = sbr.rel target = $region73
              $region78: #{classifier_forward_prepared.1} parent=63 // loop_exit
                _
            $region64: #{classifier_forward_prepared.1} parent=55 // pred_fallthru
              _
          $region56: #{classifier_forward_prepared.1} parent=51 // pred_fallthru
            _
          %827 = vnop
        $region52: #{classifier_forward_prepared.1} parent=35 // pred_fallthru
          _
      $region36: #{classifier_forward_prepared.1} parent=5 // pred_fallthru
        _
      %p828 = scmp.le.s32.totalorder 2, %s16
      // Predicated region
      $region101: #{classifier_forward_prepared.1} parent=5 // pred_check
        %p829 = pneg %p828
      $region102: #{classifier_forward_prepared.1} parent=5 // pred_check_branch
        %831 = sbr.rel (%p829) target = $region104
      $region103: #{classifier_forward_prepared.1} parent=5 // pred_region
        %s832 = ssub.s32 %s16, 2
        // Predicated region
        $region105: #{classifier_forward_prepared.1} parent=103 // pred_check
          %p833 = pneg %p139
        $region106: #{classifier_forward_prepared.1} parent=103 // pred_check_branch
          %835 = sbr.rel (%p833) target = $region108
        $region107: #{classifier_forward_prepared.1} parent=103 // pred_region
          %s836 = sand.u32 %s124, 1
          %s837 = sand.u32 %s124, 1
          %s838 = smul.addr %s837, 88
          %s839 = scalar_lea.vmem [#allocation7], %s838
        $region108: #{classifier_forward_prepared.1} parent=103 // pred_fallthru
          _
      $region104: #{classifier_forward_prepared.1} parent=5 // pred_fallthru
        _
    $region6: #{classifier_forward_prepared.1} parent=1 // loop_footer
      %s20 = sadd.s32 1, %s16
    $region7: #{classifier_forward_prepared.1} parent=1 // loop_footer_branch
      %15 = sbr.rel target = $region3
    $region8: #{classifier_forward_prepared.1} parent=1 // loop_exit
      _
    %840 = vsyncpa [#allocation3], 1
    %s841 = scalar_lea.sflag [#allocation3], 1
    %842 = vsyncpa %s841, 1
    %843 = vsyncpa [#allocation5], 1
    %s844 = scalar_lea.sflag [#allocation5], 1
    %845 = vsyncpa %s844, 1

</llo_original>
